<compile_context>
chip_gen: v7x
topology: tpu7x:2x2x1
jax: 0.10.0
libtpu: 0.0.40
codegen_flags: <defaults>
</compile_context>

<pallas_src>
import jax
import jax.numpy as jnp
from jax import lax
from jax.experimental import pallas as pl
from jax.experimental.pallas import tpu as pltpu


def _round_up(x, m):
    return ((x + m - 1) // m) * m


def _cdiv(a, b):
    return (a + b - 1) // b


# ----------------------------------------------------------------------------
# Pallas kernel: (X @ W) on the MXU -> folded (conv-bias + frozen BN) scale /
# shift -> ReLU.  Epilogue in f32.
# ----------------------------------------------------------------------------
def _backbone_kernel(x_ref, w_ref, scale_ref, shift_ref, o_ref):
    # x_ref: (tm, K) bf16   w_ref: (K, Np) bf16
    # scale_ref / shift_ref: (1, Np) f32   o_ref: (tm, Np) f32
    acc = jnp.dot(x_ref[...], w_ref[...], preferred_element_type=jnp.float32)
    y = acc * scale_ref[...] + shift_ref[...]
    o_ref[...] = jnp.maximum(y, 0.0).astype(o_ref.dtype)


def _fused_conv_bn_relu_matmul(x_mat, w_mat, scale, shift, *, tm_max=512):
    """x_mat: (M, K) bf16 patches, w_mat: (K, N) bf16, scale/shift: (N,) f32.

    Returns (M, N) f32 = ReLU((x_mat @ w_mat) * scale + shift).
    """
    M, K = x_mat.shape
    N = w_mat.shape[1]

    # Lane-dense output: pad the channel dim up to a multiple of 128.
    Np = _round_up(N, 128)
    if Np != N:
        w_mat = jnp.pad(w_mat, ((0, 0), (0, Np - N)))
        scale = jnp.pad(scale, (0, Np - N))
        shift = jnp.pad(shift, (0, Np - N))

    # Row tile: as large as useful (per-grid-step overhead ~0.35us), but keep
    # at least 2 grid steps when M allows so the parallel axis can shard over
    # two TensorCores (v7x).
    tm = min(tm_max, max(8, _round_up(_cdiv(M, 2), 8)))
    Mp = _round_up(M, tm)
    if Mp != M:
        x_mat = jnp.pad(x_mat, ((0, Mp - M), (0, 0)))

    grid = (Mp // tm,)
    scale_row = scale.reshape(1, Np).astype(jnp.float32)
    shift_row = shift.reshape(1, Np).astype(jnp.float32)

    # VMEM budget: 2x patch tile + 2x weight + 2x2 param rows + 2x output tile.
    itm = x_mat.dtype.itemsize
    req_bytes = (2 * tm * K * itm
                 + 2 * K * Np * w_mat.dtype.itemsize
                 + 4 * Np * 4
                 + 2 * tm * Np * 4)
    vmem_limit = int(min(32 << 20, max(16 << 20, 4 * req_bytes)))

    cost = pl.CostEstimate(
        flops=2 * Mp * K * Np,
        transcendentals=0,
        bytes_accessed=(Mp * K * itm + K * Np * w_mat.dtype.itemsize
                        + 2 * Np * 4 + Mp * Np * 4))

    out = pl.pallas_call(
        _backbone_kernel,
        out_shape=jax.ShapeDtypeStruct((Mp, Np), jnp.float32),
        grid_spec=pltpu.PrefetchScalarGridSpec(
            num_scalar_prefetch=0,
            grid=grid,
            in_specs=[
                pl.BlockSpec((tm, K), lambda i: (i, 0)),    # patch tile (bf16)
                pl.BlockSpec((K, Np), lambda i: (0, 0)),    # conv weight (bf16)
                pl.BlockSpec((1, Np), lambda i: (0, 0)),    # folded BN scale
                pl.BlockSpec((1, Np), lambda i: (0, 0)),    # folded BN shift
            ],
            out_specs=pl.BlockSpec((tm, Np), lambda i: (i, 0)),
        ),
        compiler_params=pltpu.CompilerParams(
            dimension_semantics=("parallel",),
            vmem_limit_bytes=vmem_limit),
        cost_estimate=cost,
    )(x_mat, w_mat, scale_row, shift_row)
    return out[:M, :N]


# ----------------------------------------------------------------------------
# Glue: im2col + layout handling (plain JAX)
# ----------------------------------------------------------------------------
def _im2col_nchw(x_nchw, kh, kw, stride, pad, dtype=jnp.bfloat16):
    """Returns patches (B*Ho*Wo, kh*kw*C) in `dtype` and (Ho, Wo)."""
    B, C, H, W = x_nchw.shape
    x = jnp.transpose(x_nchw, (0, 2, 3, 1)).astype(dtype)     # NHWC, bf16
    xp = jnp.pad(x, ((0, 0), (pad, pad), (pad, pad), (0, 0)))
    Ho = (H + 2 * pad - kh) // stride + 1
    Wo = (W + 2 * pad - kw) // stride + 1
    taps = []
    for i in range(kh):
        for j in range(kw):
            taps.append(xp[:, i:i + stride * Ho:stride,
                           j:j + stride * Wo:stride, :])       # (B,Ho,Wo,C)
    p = jnp.stack(taps, axis=3)                                # (B,Ho,Wo,kh*kw,C)
    return p.reshape(B * Ho * Wo, kh * kw * C), Ho, Wo


def backbone_forward(x_nchw, params, *, stride=2, eps=1e-5):
    """Concrete BaseBackbone forward: NCHW in -> NCHW feature map out."""
    w, b, gamma, beta, mean, var = (params[k] for k in
                                    ("w", "b", "gamma", "beta", "mean", "var"))
    C_out, C_in, kh, kw = w.shape
    B = x_nchw.shape[0]

    # Fold conv bias + frozen (eval-mode) BatchNorm into per-channel scale/shift.
    #   y = ((x*w + b) - mean) * gamma / sqrt(var+eps) + beta
    #     = (x*w) * scale + shift
    scale = (gamma.astype(jnp.float32)
             * lax.rsqrt(var.astype(jnp.float32) + eps))
    shift = (beta.astype(jnp.float32)
             + (b.astype(jnp.float32) - mean.astype(jnp.float32)) * scale)

    x_mat, Ho, Wo = _im2col_nchw(x_nchw, kh, kw, stride, pad=1,
                                 dtype=jnp.bfloat16)
    # (C_out, C_in, kh, kw) -> (kh, kw, C_in, C_out) -> (kh*kw*C_in, C_out)
    w_mat = jnp.transpose(w, (2, 3, 1, 0)).reshape(kh * kw * C_in, C_out)
    w_mat = w_mat.astype(jnp.bfloat16)

    out_mat = _fused_conv_bn_relu_matmul(x_mat, w_mat, scale, shift)
    out = out_mat.reshape(B, Ho, Wo, C_out)
    return jnp.transpose(out, (0, 3, 1, 2))                    # back to NCHW


# ----------------------------------------------------------------------------
# Pure-JAX f32 reference for a correctness check
# ----------------------------------------------------------------------------
def backbone_reference(x_nchw, params, *, stride=2, eps=1e-5):
    w, b, gamma, beta, mean, var = (params[k] for k in
                                    ("w", "b", "gamma", "beta", "mean", "var"))
    y = lax.conv_general_dilated(
        x_nchw.astype(jnp.float32), w.astype(jnp.float32),
        window_strides=(stride, stride), padding=((1, 1), (1, 1)),
        dimension_numbers=("NCHW", "OIHW", "NCHW"))
    y = y + b[None, :, None, None]
    y = (y - mean[None, :, None, None]) * lax.rsqrt(
        var[None, :, None, None] + eps) * gamma[None, :, None, None] \
        + beta[None, :, None, None]
    return jnp.maximum(y, 0.0)


if __name__ == "__main__":
    key = jax.random.PRNGKey(0)
    k_x, k_w, k_b, k_g, k_be, k_m, k_v = jax.random.split(key, 7)

    B, C_in, H, W = 2, 4, 16, 16
    C_out, KH, KW = 32, 3, 3
    STRIDE = 2

    x = jax.random.normal(k_x, (B, C_in, H, W), dtype=jnp.float32)
    params = {
        "w": 0.1 * jax.random.normal(k_w, (C_out, C_in, KH, KW), jnp.float32),
        "b": 0.05 * jax.random.normal(k_b, (C_out,), jnp.float32),
        "gamma": 1.0 + 0.1 * jax.random.normal(k_g, (C_out,), jnp.float32),
        "beta": 0.1 * jax.random.normal(k_be, (C_out,), jnp.float32),
        "mean": 0.1 * jax.random.normal(k_m, (C_out,), jnp.float32),
        "var": jnp.abs(1.0 + 0.1 * jax.random.normal(k_v, (C_out,),
                                                     jnp.float32)),
    }
    # TODO(synk): BaseBackbone.forward is abstract; this is the minimal
    # concrete conv+frozen-BN+ReLU backbone consistent with its contract.

    out = jax.block_until_ready(backbone_forward(x, params, stride=STRIDE))
    ref = jax.block_until_ready(backbone_reference(x, params, stride=STRIDE))

    assert out.shape == (B, C_out, H // STRIDE, W // STRIDE), out.shape
    # bf16 matmul (f32 accumulation) vs f32 reference -> looser tolerance.
    assert jnp.allclose(out, ref, atol=2e-2, rtol=2e-2), "mismatch vs reference"
    print("KERNEL_OK")
</pallas_src>

<mosaic_0001>
module attributes {stable_mosaic.version = 11 : i64} {
  func.func @_backbone_kernel(%arg0: i32, %arg1: memref<64x36xbf16, #tpu.memory_space<vmem>>, %arg2: memref<36x128xbf16, #tpu.memory_space<vmem>>, %arg3: memref<1x128xf32, #tpu.memory_space<vmem>>, %arg4: memref<1x128xf32, #tpu.memory_space<vmem>>, %arg5: memref<64x128xf32, #tpu.memory_space<vmem>>) attributes {dimension_semantics = [#tpu.dimension_semantics<parallel>], iteration_bounds = array<i64: 2>, scalar_prefetch = 0 : i64, scratch_operands = 0 : i64, tpu.core_type = #tpu.core_type<tc>, window_params = [{transform_indices = @transform_0, window_bounds = array<i64: 64, 36>}, {pipeline_mode = #tpu.pipeline_mode<synchronous>, transform_indices = @transform_1, window_bounds = array<i64: 36, 128>}, {pipeline_mode = #tpu.pipeline_mode<synchronous>, transform_indices = @transform_2, window_bounds = array<i64: 1, 128>}, {pipeline_mode = #tpu.pipeline_mode<synchronous>, transform_indices = @transform_3, window_bounds = array<i64: 1, 128>}, {transform_indices = @transform_4, window_bounds = array<i64: 64, 128>}]} {
    %c0 = arith.constant 0 : index
    %c0_0 = arith.constant 0 : index
    %0 = vector.load %arg1[%c0, %c0_0] : memref<64x36xbf16, #tpu.memory_space<vmem>>, vector<64x36xbf16>
    %c0_1 = arith.constant 0 : index
    %c0_2 = arith.constant 0 : index
    %1 = vector.load %arg2[%c0_1, %c0_2] : memref<36x128xbf16, #tpu.memory_space<vmem>>, vector<36x128xbf16>
    %cst = arith.constant dense<0.000000e+00> : vector<64x128xf32>
    %2 = tpu.matmul %0, %1, %cst {dimension_numbers = #tpu.dot_dimension_numbers<[1], [0], [0], [1], [0, 0, 1, 1], [], []>} : vector<64x36xbf16>, vector<36x128xbf16>, vector<64x128xf32> -> vector<64x128xf32>
    %c0_3 = arith.constant 0 : index
    %c0_4 = arith.constant 0 : index
    %3 = vector.load %arg3[%c0_3, %c0_4] : memref<1x128xf32, #tpu.memory_space<vmem>>, vector<1x128xf32>
    %4 = vector.broadcast %3 : vector<1x128xf32> to vector<64x128xf32>
    %5 = arith.mulf %2, %4 : vector<64x128xf32>
    %c0_5 = arith.constant 0 : index
    %c0_6 = arith.constant 0 : index
    %6 = vector.load %arg4[%c0_5, %c0_6] : memref<1x128xf32, #tpu.memory_space<vmem>>, vector<1x128xf32>
    %7 = vector.broadcast %6 : vector<1x128xf32> to vector<64x128xf32>
    %8 = arith.addf %5, %7 : vector<64x128xf32>
    %cst_7 = arith.constant 0.000000e+00 : f32
    %9 = vector.broadcast %cst_7 : f32 to vector<64x128xf32>
    %10 = arith.maximumf %8, %9 : vector<64x128xf32>
    %c0_8 = arith.constant 0 : index
    %c0_9 = arith.constant 0 : index
    %11 = vector.load %arg5[%c0_8, %c0_9] : memref<64x128xf32, #tpu.memory_space<vmem>>, vector<64x128xf32>
    tpu.vector_store %arg5[%c0_8, %c0_9], %10 {strides = array<i32>} : memref<64x128xf32, #tpu.memory_space<vmem>>, vector<64x128xf32>,
    return
  }
  func.func @transform_0(%arg0: i32) -> (i32, i32) {
    %c0_i32 = arith.constant 0 : i32
    %c0_i32_0 = arith.constant 0 : i32
    return %arg0, %c0_i32 : i32, i32
  }
  func.func @transform_1(%arg0: i32) -> (i32, i32) {
    %c0_i32 = arith.constant 0 : i32
    %c0_i32_0 = arith.constant 0 : i32
    %c0_i32_1 = arith.constant 0 : i32
    return %c0_i32, %c0_i32_0 : i32, i32
  }
  func.func @transform_2(%arg0: i32) -> (i32, i32) {
    %c0_i32 = arith.constant 0 : i32
    %c0_i32_0 = arith.constant 0 : i32
    %c0_i32_1 = arith.constant 0 : i32
    return %c0_i32, %c0_i32_0 : i32, i32
  }
  func.func @transform_3(%arg0: i32) -> (i32, i32) {
    %c0_i32 = arith.constant 0 : i32
    %c0_i32_0 = arith.constant 0 : i32
    %c0_i32_1 = arith.constant 0 : i32
    return %c0_i32, %c0_i32_0 : i32, i32
  }
  func.func @transform_4(%arg0: i32) -> (i32, i32) {
    %c0_i32 = arith.constant 0 : i32
    %c0_i32_0 = arith.constant 0 : i32
    return %arg0, %c0_i32 : i32, i32
  }
}

</mosaic_0001>

<llo_original>
// kernel: tpu_custom_call.1
$region0: #{tpu_custom_call.1}
  #allocation0 [shape = 'u32[]', space=smem, size = 0x4, offset = 0x4, fixed_abs, tag = 'smem constant byte address 0x4 - core index']
  #allocation1 [shape = 'u32[144,128]{1,0:T(1,128)}', space=vmem, size = 0x12000, scoped, tag = 'internal scratch']
  %s0 = inlined_call_operand.vmem [shape: bf16[128,36], index: 0, kind: input, shape index: {}]
  %s1 = inlined_call_operand.vmem [shape: bf16[36,128], index: 1, kind: input, shape index: {}]
  %s2 = inlined_call_operand.vmem [shape: f32[1,128], index: 2, kind: input, shape index: {}]
  %s3 = inlined_call_operand.vmem [shape: f32[1,128], index: 3, kind: input, shape index: {}]
  %s4 = inlined_call_operand.hbm [shape: f32[128,128], index: 4, kind: output, shape index: {}]
  %s5 = sld [smem:[#allocation0]]
  $region49: #{tpu_custom_call.1} parent=0
    _
  %s7 = ssub.s32 1, %s5
  %s8 = scalar_select 0, %s7, %s5
  $region1: #{tpu_custom_call.1} parent=0
    #allocation2 [shape = 'u8[65536]{0}', space=vmem, size = 0x10000, scoped, tag = 'output window, operand 0']
    #allocation3 [shape = 's32[2]{0}', space=sflag, size = 0x8, scoped, tag = 'scoped memory for tpu_custom_call.1']
    %9 = vsyncpa [#allocation3], 0
    %s10 = scalar_lea.sflag [#allocation3], 1
    %11 = vsyncpa %s10, 0
    loop: start=0, step=1, limit=4
    $region2: #{tpu_custom_call.1} parent=1 // loop_pre_header
      _
    $region3: #{tpu_custom_call.1} parent=1 // loop_header
      %s13 = sphi 0, %s17
      %p14 = scmp.ge.s32.totalorder %s13, 4
      %s23 = sphi 0, %s25
      %s26 = sphi 0, %s23
      %s27 = sphi 0, %s26
      %s43 = sphi 0, %s27
      %s47 = sphi 0, %s47
      %s49 = sphi 0, %s47
      %s50 = sphi 0, %s49
      %s64 = sphi 0, %s50
      %s68 = sphi 0, %s68
      %s70 = sphi 0, %s68
      %s71 = sphi 0, %s70
      %s85 = sphi 0, %s71
      %s89 = sphi 0, %s89
      %s91 = sphi 0, %s89
      %s92 = sphi 0, %s91
      %s106 = sphi 0, %s92
      %s112 = sphi 0, %s114
      %s115 = sphi 0, %s112
      %s116 = sphi 0, %s115
      %s132 = sphi 0, %s116
    $region4: #{tpu_custom_call.1} parent=1 // loop_header_branch
      %16 = sbr.rel (%p14) target = $region8
    $region5: #{tpu_custom_call.1} parent=1 // loop_body
      %s18 = ssub.s32 %s13, 1
      %s19 = ssub.s32 %s13, 2
      %s20 = sadd.s32 %s13, 1
      %s21 = ssub.s32 %s13, %s20
      %p22 = scmp.eq.s32.totalorder %s21, 0
      %s24 = sadd.s32 %s23, 1
      %s25 = scalar_select %p22, %s23, %s24
      %p28 = pneg %p22
      %p29 = scmp.eq.s32.totalorder %s13, 1
      %p30 = por %p28, %p29
      %p31 = scmp.ne.s32.totalorder %s23, %s26
      %p32 = scmp.eq.s32.totalorder %s13, 0
      %p33 = por %p31, %p32
      %p34 = scmp.ne.s32.totalorder %s23, %s26
      %p35 = scmp.eq.s32.totalorder %s18, 1
      %p36 = por %p34, %p35
      %p37 = scmp.ne.s32.totalorder %s26, %s27
      %p38 = scmp.eq.s32.totalorder %s18, 0
      %p39 = por %p37, %p38
      %p40 = scmp.ne.s32.totalorder %s26, %s27
      %p41 = scmp.eq.s32.totalorder %s19, 1
      %p42 = por %p40, %p41
      %p44 = scmp.ne.s32.totalorder %s27, %s43
      %p45 = scmp.eq.s32.totalorder %s19, 0
      %p46 = por %p44, %p45
      %s48 = sadd.s32 %s47, 1
      %p51 = scmp.eq.s32.totalorder %s13, 1
      %p52 = scmp.ne.s32.totalorder %s47, %s49
      %p53 = scmp.eq.s32.totalorder %s13, 0
      %p54 = por %p52, %p53
      %p55 = scmp.ne.s32.totalorder %s47, %s49
      %p56 = scmp.eq.s32.totalorder %s18, 1
      %p57 = por %p55, %p56
      %p58 = scmp.ne.s32.totalorder %s49, %s50
      %p59 = scmp.eq.s32.totalorder %s18, 0
      %p60 = por %p58, %p59
      %p61 = scmp.ne.s32.totalorder %s49, %s50
      %p62 = scmp.eq.s32.totalorder %s19, 1
      %p63 = por %p61, %p62
      %p65 = scmp.ne.s32.totalorder %s50, %s64
      %p66 = scmp.eq.s32.totalorder %s19, 0
      %p67 = por %p65, %p66
      %s69 = sadd.s32 %s68, 1
      %p72 = scmp.eq.s32.totalorder %s13, 1
      %p73 = scmp.ne.s32.totalorder %s68, %s70
      %p74 = scmp.eq.s32.totalorder %s13, 0
      %p75 = por %p73, %p74
      %p76 = scmp.ne.s32.totalorder %s68, %s70
      %p77 = scmp.eq.s32.totalorder %s18, 1
      %p78 = por %p76, %p77
      %p79 = scmp.ne.s32.totalorder %s70, %s71
      %p80 = scmp.eq.s32.totalorder %s18, 0
      %p81 = por %p79, %p80
      %p82 = scmp.ne.s32.totalorder %s70, %s71
      %p83 = scmp.eq.s32.totalorder %s19, 1
      %p84 = por %p82, %p83
      %p86 = scmp.ne.s32.totalorder %s71, %s85
      %p87 = scmp.eq.s32.totalorder %s19, 0
      %p88 = por %p86, %p87
      %s90 = sadd.s32 %s89, 1
      %p93 = scmp.eq.s32.totalorder %s13, 1
      %p94 = scmp.ne.s32.totalorder %s89, %s91
      %p95 = scmp.eq.s32.totalorder %s13, 0
      %p96 = por %p94, %p95
      %p97 = scmp.ne.s32.totalorder %s89, %s91
      %p98 = scmp.eq.s32.totalorder %s18, 1
      %p99 = por %p97, %p98
      %p100 = scmp.ne.s32.totalorder %s91, %s92
      %p101 = scmp.eq.s32.totalorder %s18, 0
      %p102 = por %p100, %p101
      %p103 = scmp.ne.s32.totalorder %s91, %s92
      %p104 = scmp.eq.s32.totalorder %s19, 1
      %p105 = por %p103, %p104
      %p107 = scmp.ne.s32.totalorder %s92, %s106
      %p108 = scmp.eq.s32.totalorder %s19, 0
      %p109 = por %p107, %p108
      %s110 = ssub.s32 %s13, %s20
      %p111 = scmp.eq.s32.totalorder %s110, 0
      %s113 = sadd.s32 %s112, 1
      %s114 = scalar_select %p111, %s112, %s113
      %p117 = pneg %p111
      %p118 = scmp.eq.s32.totalorder %s13, 1
      %p119 = por %p117, %p118
      %p120 = scmp.ne.s32.totalorder %s112, %s115
      %p121 = scmp.eq.s32.totalorder %s13, 0
      %p122 = por %p120, %p121
      %p123 = scmp.ne.s32.totalorder %s112, %s115
      %p124 = scmp.eq.s32.totalorder %s18, 1
      %p125 = por %p123, %p124
      %p126 = scmp.ne.s32.totalorder %s115, %s116
      %p127 = scmp.eq.s32.totalorder %s18, 0
      %p128 = por %p126, %p127
      %p129 = scmp.ne.s32.totalorder %s115, %s116
      %p130 = scmp.eq.s32.totalorder %s19, 1
      %p131 = por %p129, %p130
      %p133 = scmp.ne.s32.totalorder %s116, %s132
      %p134 = scmp.eq.s32.totalorder %s19, 0
      %p135 = por %p133, %p134
      %p136 = scmp.le.s32.totalorder 1, %s13
      %p137 = scmp.lt.s32.totalorder %s13, 3
      %p138 = pnand %p136, %p137
      %p139 = pneg %p138
      // Predicated region
      $region9: #{tpu_custom_call.1} parent=5 // pred_check
        _
      $region10: #{tpu_custom_call.1} parent=5 // pred_check_branch
        %141 = sbr.rel (%p138) target = $region12
      $region11: #{tpu_custom_call.1} parent=5 // pred_region
        %s142 = ssub.s32 %s13, 1
        // Predicated region
        $region13: #{tpu_custom_call.1} parent=11 // pred_check
          %p143 = pneg %p60
        $region14: #{tpu_custom_call.1} parent=11 // pred_check_branch
          %145 = sbr.rel (%p143) target = $region16
        $region15: #{tpu_custom_call.1} parent=11 // pred_region
          _
        $region16: #{tpu_custom_call.1} parent=11 // pred_fallthru
          _
        // Predicated region
        $region17: #{tpu_custom_call.1} parent=11 // pred_check
          %p146 = pneg %p81
        $region18: #{tpu_custom_call.1} parent=11 // pred_check_branch
          %148 = sbr.rel (%p146) target = $region20
        $region19: #{tpu_custom_call.1} parent=11 // pred_region
          _
        $region20: #{tpu_custom_call.1} parent=11 // pred_fallthru
          _
        // Predicated region
        $region21: #{tpu_custom_call.1} parent=11 // pred_check
          %p149 = pneg %p102
        $region22: #{tpu_custom_call.1} parent=11 // pred_check_branch
          %151 = sbr.rel (%p149) target = $region24
        $region23: #{tpu_custom_call.1} parent=11 // pred_region
          _
        $region24: #{tpu_custom_call.1} parent=11 // pred_fallthru
          _
      $region12: #{tpu_custom_call.1} parent=5 // pred_fallthru
        _
      %p152 = scmp.lt.s32.totalorder %s13, 2
      // Predicated region
      $region25: #{tpu_custom_call.1} parent=5 // pred_check
        %p153 = pneg %p152
      $region26: #{tpu_custom_call.1} parent=5 // pred_check_branch
        %155 = sbr.rel (%p153) target = $region28
      $region27: #{tpu_custom_call.1} parent=5 // pred_region
        // Predicated region
        $region29: #{tpu_custom_call.1} parent=27 // pred_check
          %p156 = pneg %p33
        $region30: #{tpu_custom_call.1} parent=27 // pred_check_branch
          %158 = sbr.rel (%p156) target = $region32
        $region31: #{tpu_custom_call.1} parent=27 // pred_region
          %s159 = smul.u32 8, %s13
          %p160 = scmp.lt.s32.totalorder %s159, 15
          %s161 = scalar_select %p160, %s159, 15
          %s162 = smul.addr %s161, 4
          %s163 = scalar_lea.vmem %s0, %s162
          %s164 = smul.u32 8, %s13
        $region32: #{tpu_custom_call.1} parent=27 // pred_fallthru
          _
      $region28: #{tpu_custom_call.1} parent=5 // pred_fallthru
        _
      %p165 = scmp.le.s32.totalorder 1, %s13
      %p166 = scmp.lt.s32.totalorder %s13, 3
      %p167 = pnand %p165, %p166
      %p168 = pneg %p167
      // Predicated region
      $region33: #{tpu_custom_call.1} parent=5 // pred_check
        _
      $region34: #{tpu_custom_call.1} parent=5 // pred_check_branch
        %170 = sbr.rel (%p167) target = $region36
      $region35: #{tpu_custom_call.1} parent=5 // pred_region
        %s171 = ssub.s32 %s13, 1
        %s172 = smul.u32 8, %s18
        %p173 = scmp.lt.s32.totalorder %s172, 15
        %s174 = scalar_select %p173, %s172, 15
        %s175 = smul.addr %s174, 4
        %s176 = scalar_lea.vmem %s0, %s175
        %p177 = pneg %p39
        %p178 = pneg %p36
        %p179 = pneg %p60
        %p180 = pneg %p57
        %p181 = pneg %p81
        %p182 = pneg %p78
        %p183 = pneg %p102
        %p184 = pneg %p99
        %p185 = pneg %p128
        %p186 = pneg %p125
        %s187 = sand.u32 %s115, 1
        %s188 = scalar_lea.sflag [#allocation3], %s187
        %s189 = sand.u32 %s115, 1
        %s190 = smul.addr %s189, 64
        %s191 = scalar_lea.vmem [#allocation2], %s190
        %s192 = smul.u32 8, %s18
        %p193 = scmp.lt.s32.totalorder %s192, 15
        %s194 = scalar_select %p193, %s192, 15
        %s195 = smul.addr %s194, 4
        %s196 = scalar_lea.vmem %s0, %s195
        %s197 = smul.u32 8, %s18
        %s198 = smul.u32 8, %s18
        %v200 = vld [vmem:[%s196] sm:$0xf]
        %v201 = vld [vmem:[%s196 + $0x4] sm:$0xf]
        %v202 = vld [vmem:[%s196 + $0x8] sm:$0xf]
        %v203 = vld [vmem:[%s196 + $0xc] sm:$0xf]
        %v204 = vld [vmem:[%s196 + $0x10] sm:$0xf]
        %v205 = vld [vmem:[%s196 + $0x14] sm:$0xf]
        %v206 = vld [vmem:[%s196 + $0x18] sm:$0xf]
        %v207 = vld [vmem:[%s196 + $0x1c] sm:$0xf]
        %v208 = vld [vmem:[%s1] sm:$0xf]
        %v209 = vld [vmem:[%s1 + $0x4] sm:$0xf]
        %v210 = vld [vmem:[%s1 + $0x8] sm:$0xf]
        %v211 = vld [vmem:[%s1 + $0xc] sm:$0xf]
        %v212 = vld [vmem:[%s1 + $0x10] sm:$0x3]
        %v221 = vunpack.c.l.b16 %v200
        %v222 = vunpack.c.l.b16 %v201
        %v223 = vunpack.c.l.b16 %v202
        %v224 = vunpack.c.l.b16 %v203
        %v225 = vunpack.c.l.b16 %v204
        %v226 = vunpack.c.l.b16 %v205
        %v227 = vunpack.c.l.b16 %v206
        %v228 = vunpack.c.l.b16 %v207
        %v229 = vpack.c.b16 %v222, %v221
        %v230 = vpack.c.b16 %v224, %v223
        %v231 = vpack.c.b16 %v226, %v225
        %v232 = vpack.c.b16 %v228, %v227
        %v238 = vunpack.c.l.b16 %v208
        %v239 = vunpack.c.l.b16 %v209
        %v240 = vunpack.c.l.b16 %v210
        %v241 = vunpack.c.l.b16 %v211
        %v242 = vunpack.c.l.b16 %v212
        %v243 = vpack.c.b16 %v239, %v238
        %v244 = vpack.c.b16 %v241, %v240
        %v245 = vpack.c.b16 %v242, %v242
        %vm248 = vcmask 293888
        %v250 = vsel %vm248, %v229, 0
        %v253 = vsel %vm248, %v230, 0
        %v256 = vsel %vm248, %v231, 0
        %v259 = vsel %vm248, %v232, 0
        %vm261 = vcmask 1041408
        %v263 = vsel %vm261, %v245, 0
        %265 = vmatprep.subr.bf16.mxu0 0
        %266 = vmatpush1.bf16.msra.mxu0 %v243
        %267 = vmatprep.subr.bf16.mxu0 0
        %268 = vmatpush1.bf16.msra.mxu0 %v244
        %269 = vmatprep.subr.bf16.mxu0 0
        %270 = vmatpush1.bf16.msra.mxu0 %v263
        %271 = vmatprep.subr.bf16.mxu0 0
        %272 = vmatpush1.bf16.msra.mxu0 0
        %273 = vmatprep.subr.bf16.mxu0 0
        %274 = vmatpush1.bf16.msra.mxu0 0
        %275 = vmatprep.subr.bf16.mxu0 0
        %276 = vmatpush1.bf16.msra.mxu0 0
        %277 = vmatprep.subr.bf16.mxu0 0
        %278 = vmatpush1.bf16.msra.mxu0 0
        %279 = vmatprep.subr.bf16.mxu0 0
        %280 = vmatpush1.bf16.msra.mxu0 0
        %281 = vmatprep.subr.bf16.mxu0 0
        %282 = vmatpush1.bf16.msra.mxu0 0
        %283 = vmatprep.subr.bf16.mxu0 0
        %284 = vmatpush1.bf16.msra.mxu0 0
        %285 = vmatprep.subr.bf16.mxu0 0
        %286 = vmatpush1.bf16.msra.mxu0 0
        %287 = vmatprep.subr.bf16.mxu0 0
        %288 = vmatpush1.bf16.msra.mxu0 0
        %289 = vmatprep.subr.bf16.mxu0 0
        %290 = vmatpush1.bf16.msra.mxu0 0
        %291 = vmatprep.subr.bf16.mxu0 0
        %292 = vmatpush1.bf16.msra.mxu0 0
        %293 = vmatprep.subr.bf16.mxu0 0
        %294 = vmatpush1.bf16.msra.mxu0 0
        %295 = vmatprep.subr.bf16.mxu0 0
        %296 = vmatpush1.bf16.msra.mxu0 0
        %297 = vmatprep.mubr.bf16.mxu0 0
        %298 = vmatmul.mubr.bf16.gmra.mrb[0].mxu0 %v250
        %v299 = vpop.f32.mrb[0].mxu0
        %v300 = vadd.f32 0.0, %v299
        %v301 = vpop.f32.mrb[0].mxu0
        %v302 = vpop.f32.mrb[0].mxu0
        %v303 = vadd.f32 0.0, %v302
        %v304 = vpop.f32.mrb[0].mxu0
        %305 = vmatprep.mubr.bf16.mxu0 0
        %306 = vmatmul.mubr.bf16.gmra.mrb[0].mxu0 %v253
        %v307 = vpop.f32.mrb[0].mxu0
        %v308 = vadd.f32 0.0, %v307
        %v309 = vpop.f32.mrb[0].mxu0
        %v310 = vpop.f32.mrb[0].mxu0
        %v311 = vadd.f32 0.0, %v310
        %v312 = vpop.f32.mrb[0].mxu0
        %313 = vmatprep.mubr.bf16.mxu0 0
        %314 = vmatmul.mubr.bf16.gmra.mrb[0].mxu0 %v256
        %v315 = vpop.f32.mrb[0].mxu0
        %v316 = vadd.f32 0.0, %v315
        %v317 = vpop.f32.mrb[0].mxu0
        %v318 = vpop.f32.mrb[0].mxu0
        %v319 = vadd.f32 0.0, %v318
        %v320 = vpop.f32.mrb[0].mxu0
        %321 = vmatprep.mubr.bf16.mxu0 0
        %322 = vmatmul.mubr.bf16.gmra.mrb[0].mxu0 %v259
        %v323 = vpop.f32.mrb[0].mxu0
        %v324 = vadd.f32 0.0, %v323
        %v325 = vpop.f32.mrb[0].mxu0
        %v326 = vpop.f32.mrb[0].mxu0
        %v327 = vadd.f32 0.0, %v326
        %v328 = vpop.f32.mrb[0].mxu0
        %329 = vdwg.mxu0
        %v330 = vld [vmem:[%s2] sm:$0x1]
        %v332 = vlaneseq
        %v333 = vshrl.u32 %v332, 7
        %v334 = vsub.s32 0, %v333
        %v335 = vrot.slane %v330, %v334
        %v337 = vmul.f32 %v300, %v335
        %v338 = vmul.f32 %v303, %v335
        %v339 = vmul.f32 %v308, %v335
        %v340 = vmul.f32 %v311, %v335
        %v341 = vmul.f32 %v316, %v335
        %v342 = vmul.f32 %v319, %v335
        %v343 = vmul.f32 %v324, %v335
        %v344 = vmul.f32 %v327, %v335
        %v345 = vld [vmem:[%s3] sm:$0x1]
        %v347 = vlaneseq
        %v348 = vshrl.u32 %v347, 7
        %v349 = vsub.s32 0, %v348
        %v350 = vrot.slane %v345, %v349
        %v352 = vadd.f32 %v337, %v350
        %v353 = vadd.f32 %v338, %v350
        %v354 = vadd.f32 %v339, %v350
        %v355 = vadd.f32 %v340, %v350
        %v356 = vadd.f32 %v341, %v350
        %v357 = vadd.f32 %v342, %v350
        %v358 = vadd.f32 %v343, %v350
        %v359 = vadd.f32 %v344, %v350
        %v360 = vmax.f32 %v352, 0.0
        %v361 = vmax.f32 %v353, 0.0
        %v362 = vmax.f32 %v354, 0.0
        %v363 = vmax.f32 %v355, 0.0
        %v364 = vmax.f32 %v356, 0.0
        %v365 = vmax.f32 %v357, 0.0
        %v366 = vmax.f32 %v358, 0.0
        %v367 = vmax.f32 %v359, 0.0
        %368 = vst [vmem:[%s191] sm:$0xff] %v360
        %369 = vst [vmem:[%s191 + $0x8] sm:$0xff] %v361
        %370 = vst [vmem:[%s191 + $0x10] sm:$0xff] %v362
        %371 = vst [vmem:[%s191 + $0x18] sm:$0xff] %v363
        %372 = vst [vmem:[%s191 + $0x20] sm:$0xff] %v364
        %373 = vst [vmem:[%s191 + $0x28] sm:$0xff] %v365
        %374 = vst [vmem:[%s191 + $0x30] sm:$0xff] %v366
        %375 = vst [vmem:[%s191 + $0x38] sm:$0xff] %v367
        %s376 = sand.u32 %s115, 1
        %s377 = scalar_lea.sflag [#allocation3], %s376
        %s378 = sand.u32 %s115, 1
        %s379 = smul.addr %s378, 64
        %s380 = scalar_lea.vmem [#allocation2], %s379
        // Predicated region
        $region37: #{tpu_custom_call.1} parent=35 // pred_check
          %p381 = pneg %p125
        $region38: #{tpu_custom_call.1} parent=35 // pred_check_branch
          %383 = sbr.rel (%p381) target = $region40
        $region39: #{tpu_custom_call.1} parent=35 // pred_region
          %s384 = smul.u32 8, %s18
          %s386 = ssub.s32 1024, 1024
          %387 = vsyncadd %s377, %s386
          %s388 = smul.addr %s384, 128
          %s389 = scalar_lea.hbm %s4, %s388
          %s390 = sshll.u32 %s380, 4
          %s391 = int_to_ptr.vmem [resolvable:$true] %s390
          %396 = dma.vmem_to_hbm [thread:$0]  %s391, 1024, %s389, %s377, 128, 128, 8
        $region40: #{tpu_custom_call.1} parent=35 // pred_fallthru
          _
      $region36: #{tpu_custom_call.1} parent=5 // pred_fallthru
        _
      %p397 = scmp.le.s32.totalorder 2, %s13
      // Predicated region
      $region41: #{tpu_custom_call.1} parent=5 // pred_check
        %p398 = pneg %p397
      $region42: #{tpu_custom_call.1} parent=5 // pred_check_branch
        %400 = sbr.rel (%p398) target = $region44
      $region43: #{tpu_custom_call.1} parent=5 // pred_region
        %s401 = ssub.s32 %s13, 2
        // Predicated region
        $region45: #{tpu_custom_call.1} parent=43 // pred_check
          %p402 = pneg %p131
        $region46: #{tpu_custom_call.1} parent=43 // pred_check_branch
          %404 = sbr.rel (%p402) target = $region48
        $region47: #{tpu_custom_call.1} parent=43 // pred_region
          %s405 = sand.u32 %s116, 1
          %s406 = scalar_lea.sflag [#allocation3], %s405
          %s407 = sand.u32 %s116, 1
          %s408 = smul.addr %s407, 64
          %s409 = scalar_lea.vmem [#allocation2], %s408
          %410 = dma.done %s406, 1024
        $region48: #{tpu_custom_call.1} parent=43 // pred_fallthru
          _
      $region44: #{tpu_custom_call.1} parent=5 // pred_fallthru
        _
    $region6: #{tpu_custom_call.1} parent=1 // loop_footer
      %s17 = sadd.s32 1, %s13
    $region7: #{tpu_custom_call.1} parent=1 // loop_footer_branch
      %12 = sbr.rel target = $region3
    $region8: #{tpu_custom_call.1} parent=1 // loop_exit
      _
    %411 = vsyncpa [#allocation3], 1
    %s412 = scalar_lea.sflag [#allocation3], 1
    %413 = vsyncpa %s412, 1

</llo_original>
